<compile_context>
chip_gen: v7x
topology: tpu7x:2x2x1
jax: 0.10.0
libtpu: 0.0.40
codegen_flags: <defaults>
</compile_context>

<pallas_src>
import jax
import jax.numpy as jnp
from jax.experimental import pallas as pl
from jax.experimental.pallas import tpu as pltpu


def _adv_loss_kernel(real_ref, fake_ref, out_ref):
    # real_ref: SMEM f32[1]  (discriminator output on real data)
    # fake_ref: SMEM f32[1]  (discriminator output on generated data)
    # out_ref : VMEM f32[1, 1]
    r = jnp.full((1, 1), real_ref[0], dtype=jnp.float32)          # splat real  -> (1,1)
    g = 1.0 - jnp.full((1, 1), fake_ref[0], dtype=jnp.float32)    # 1 - fake, in-kernel (VPU)

    log_r = jnp.maximum(jnp.log(r), -100.0)   # clamp(log(real),   min=-100)  (EUP push #1)
    log_g = jnp.maximum(jnp.log(g), -100.0)   # clamp(log(1-fake), min=-100)  (EUP push #2)

    # loss = BCE(real, 1) + BCE(fake, 0) = -(log_r + log_g)  -> (1, 1)
    out_ref[...] = -(log_r + log_g)


def adversarial_own_loss(real: jax.Array, fake: jax.Array) -> jax.Array:
    """real, fake: (1, 1) float32 probabilities (discriminator outputs).
    Returns (1, 1) float32 loss = BCE(real, 1) + BCE(fake, 0)."""
    assert real.shape == (1, 1) and fake.shape == (1, 1), "BCELoss targets are (1,1)"
    # Reshape only (layout metadata, no arithmetic, no extra fusion): all math is in-kernel.
    real_s = real.astype(jnp.float32).reshape(1)
    fake_s = fake.astype(jnp.float32).reshape(1)

    out = pl.pallas_call(
        _adv_loss_kernel,
        out_shape=jax.ShapeDtypeStruct((1, 1), jnp.float32),
        in_specs=[
            pl.BlockSpec(memory_space=pltpu.MemorySpace.SMEM),
            pl.BlockSpec(memory_space=pltpu.MemorySpace.SMEM),
        ],
        out_specs=pl.BlockSpec(memory_space=pltpu.MemorySpace.VMEM),
        cost_estimate=pl.CostEstimate(flops=8, transcendentals=2, bytes_accessed=16),
    )(real_s, fake_s)
    return out


def _reference(real, fake):
    # Pure-JAX reference mirroring torch.nn.BCELoss semantics (with -100 log clamp).
    l1 = -jnp.mean(jnp.maximum(jnp.log(real), -100.0))
    l2 = -jnp.mean(jnp.maximum(jnp.log(1.0 - fake), -100.0))
    return (l1 + l2).reshape(1, 1)


if __name__ == "__main__":
    key = jax.random.PRNGKey(0)
    k_real, k_fake = jax.random.split(key)

    # Discriminator outputs in (0, 1), shape (1, 1) to match the module's targets.
    real = jax.nn.sigmoid(jax.random.normal(k_real, (1, 1), dtype=jnp.float32))
    fake = jax.nn.sigmoid(jax.random.normal(k_fake, (1, 1), dtype=jnp.float32))

    loss = adversarial_own_loss(real, fake)
    loss = jax.block_until_ready(loss)

    ref = _reference(real, fake)
    assert jnp.allclose(loss, ref, atol=1e-5, rtol=1e-5), (loss, ref)

    print("KERNEL_OK")
</pallas_src>

<mosaic_0001>
module attributes {stable_mosaic.version = 11 : i64} {
  func.func @_adv_loss_kernel(%arg0: memref<1xf32, #tpu.memory_space<smem>>, %arg1: memref<1xf32, #tpu.memory_space<smem>>, %arg2: memref<1x1xf32, #tpu.memory_space<vmem>>) attributes {dimension_semantics = [], scalar_prefetch = 0 : i64, scratch_operands = 0 : i64, tpu.core_type = #tpu.core_type<tc>} {
    %c0 = arith.constant 0 : index
    %0 = memref.load %arg0[%c0] : memref<1xf32, #tpu.memory_space<smem>>
    %1 = vector.broadcast %0 : f32 to vector<1x1xf32>
    %c0_0 = arith.constant 0 : index
    %2 = memref.load %arg1[%c0_0] : memref<1xf32, #tpu.memory_space<smem>>
    %3 = vector.broadcast %2 : f32 to vector<1x1xf32>
    %cst = arith.constant 1.000000e+00 : f32
    %4 = vector.broadcast %cst : f32 to vector<1x1xf32>
    %5 = arith.subf %4, %3 : vector<1x1xf32>
    %6 = math.log %1 : vector<1x1xf32>
    %cst_1 = arith.constant -1.000000e+02 : f32
    %7 = vector.broadcast %cst_1 : f32 to vector<1x1xf32>
    %8 = arith.maximumf %6, %7 : vector<1x1xf32>
    %9 = math.log %5 : vector<1x1xf32>
    %cst_2 = arith.constant -1.000000e+02 : f32
    %10 = vector.broadcast %cst_2 : f32 to vector<1x1xf32>
    %11 = arith.maximumf %9, %10 : vector<1x1xf32>
    %12 = arith.addf %8, %11 : vector<1x1xf32>
    %cst_3 = arith.constant 0.000000e+00 : f32
    %13 = vector.broadcast %cst_3 : f32 to vector<1x1xf32>
    %14 = arith.subf %13, %12 : vector<1x1xf32>
    %c0_4 = arith.constant 0 : index
    %c0_5 = arith.constant 0 : index
    %15 = vector.load %arg2[%c0_4, %c0_5] : memref<1x1xf32, #tpu.memory_space<vmem>>, vector<1x1xf32>
    tpu.vector_store %arg2[%c0_4, %c0_5], %14 {strides = array<i32>} : memref<1x1xf32, #tpu.memory_space<vmem>>, vector<1x1xf32>,
    return
  }
}

</mosaic_0001>

<llo_original>
// kernel: tpu_custom_call.1
$region0: #{tpu_custom_call.1}
  #allocation0 [shape = 'u32[]', space=smem, size = 0x4, offset = 0x4, fixed_abs, tag = 'smem constant byte address 0x4 - core index']
  #allocation1 [shape = 'u32[144,128]{1,0:T(1,128)}', space=vmem, size = 0x12000, scoped, tag = 'internal scratch']
  #allocation2 [shape = 'f32[1]{0:T(128)S(6)}', space=smem, size = 0x200, scoped, tag = 'scoped memory for tpu_custom_call.1']
  #allocation3 [shape = 'f32[1]{0:T(128)S(6)}', space=smem, size = 0x200, scoped, tag = 'scoped memory for tpu_custom_call.1']
  %s0 = inlined_call_operand.<no memory space> [shape: f32[1], index: 0, kind: input, shape index: {}]
  %s1 = inlined_call_operand.<no memory space> [shape: f32[1], index: 1, kind: input, shape index: {}]
  %s2 = inlined_call_operand.hbm [shape: f32[1,1], index: 2, kind: output, shape index: {}]
  %s3 = sld [smem:[#allocation0]]
  $region18: #{tpu_custom_call.1} parent=0
    _
  %s5 = ssub.s32 1, %s3
  %s6 = scalar_select 0, %s5, %s3
  %7 = sst [smem:[#allocation2]] %s0
  %8 = sst [smem:[#allocation3]] %s1
  $region1: #{tpu_custom_call.1} parent=0
    #allocation4 [shape = 'u8[512]{0}', space=vmem, size = 0x400, scoped, tag = 'output window, operand 0, single buffered']
    #allocation5 [shape = 's32[1]{0}', space=sflag, size = 0x4, scoped, tag = 'scoped memory for tpu_custom_call.1']
    %9 = vsyncpa [#allocation5], 0
    // Predicated region
    $region2: #{tpu_custom_call.1} parent=1 // pred_check
      _
    $region3: #{tpu_custom_call.1} parent=1 // pred_check_branch
      %11 = sbr.rel (0) target = $region5
    $region4: #{tpu_custom_call.1} parent=1 // pred_region
      _
    $region5: #{tpu_custom_call.1} parent=1 // pred_fallthru
      _
    // Predicated region
    $region6: #{tpu_custom_call.1} parent=1 // pred_check
      _
    $region7: #{tpu_custom_call.1} parent=1 // pred_check_branch
      %13 = sbr.rel (0) target = $region9
    $region8: #{tpu_custom_call.1} parent=1 // pred_region
      _
    $region9: #{tpu_custom_call.1} parent=1 // pred_fallthru
      _
    %s14 = sld [smem:[#allocation2]]
    %v15 = vstv %s14
    %s16 = sld [smem:[#allocation3]]
    %v17 = vstv %s16
    %v18 = vsub.f32 1.0, %v17
    %v19 = vlog2.pop %v15
    %v20 = vmul.f32 %v19, 0.6931472
    %v21 = vmax.f32 %v20, -100.0
    %v22 = vlog2.pop %v18
    %v23 = vmul.f32 %v22, 0.6931472
    %v24 = vmax.f32 %v23, -100.0
    %v25 = vadd.f32 %v21, %v24
    %v26 = vsub.f32 0.0, %v25
    %vm27 = vcmask 0
    %28 = vst.msk [vmem:[#allocation4] sm:$0x1] %vm27, %v26
    // Predicated region
    $region10: #{tpu_custom_call.1} parent=1 // pred_check
      _
    $region11: #{tpu_custom_call.1} parent=1 // pred_check_branch
      %30 = sbr.rel (0) target = $region13
    $region12: #{tpu_custom_call.1} parent=1 // pred_region
      %s32 = ssub.s32 16, 16
      %33 = vsyncadd [#allocation5], %s32
      %s35 = sshll.u32 [#allocation4], 4
      %s36 = int_to_ptr.vmem [resolvable:$true] %s35
      %38 = dma.vmem_to_hbm [thread:$0]  %s36, 16, %s2, [#allocation5]
    $region13: #{tpu_custom_call.1} parent=1 // pred_fallthru
      _
    // Predicated region
    $region14: #{tpu_custom_call.1} parent=1 // pred_check
      _
    $region15: #{tpu_custom_call.1} parent=1 // pred_check_branch
      %40 = sbr.rel (0) target = $region17
    $region16: #{tpu_custom_call.1} parent=1 // pred_region
      %41 = dma.done [#allocation5], 16
    $region17: #{tpu_custom_call.1} parent=1 // pred_fallthru
      _
    %42 = vsyncpa [#allocation5], 1

</llo_original>
